<compile_context>
chip_gen: v7x
topology: tpu7x:2x2x1
jax: 0.10.0
libtpu: 0.0.40
codegen_flags: <defaults>
</compile_context>

<pallas_src>
import jax
import jax.numpy as jnp
import numpy as np
from jax.experimental import pallas as pl
from jax.experimental.pallas import tpu as pltpu

IN_FEATURES = 28 * 28          # 784
OUT_PAD = 128                  # lane-dense output tile (classes padded 10 -> 128)


def _lwta_pair(h, even_lane):
    """Local winner-take-all over adjacent feature pairs (window = 2).

    partner[b, j] = h[b, j ^ 1], built from two XLU rolls + a lane-parity select
    (wraparound lanes are masked out by the parity select). Winner keeps its value,
    loser -> 0; ties keep both.
    """
    hsz = h.shape[1]
    nxt = pltpu.roll(h, hsz - 1, 1)   # nxt[:, j] = h[:, j + 1]   (== roll by -1)
    prv = pltpu.roll(h, 1, 1)         # prv[:, j] = h[:, j - 1]
    partner = jnp.where(even_lane, nxt, prv)
    return jnp.where(h >= partner, h, 0.0)


def mlp_lwta_kernel(x_ref, w1_ref, b1_ref, w2_ref, b2_ref, w3_ref, b3_ref, out_ref):
    x = x_ref[...].astype(jnp.bfloat16)                       # (TB, 784) f32 -> bf16
    hidden = w1_ref.shape[1]

    # (1, hidden) parity mask; jnp.where broadcasts it across the batch tile for free.
    even_lane = (jax.lax.broadcasted_iota(jnp.int32, (1, hidden), 1) & 1) == 0

    h1 = jnp.dot(x, w1_ref[...], preferred_element_type=jnp.float32) + b1_ref[...]
    h1 = _lwta_pair(h1, even_lane)                            # f32 elementwise

    h2 = jnp.dot(h1.astype(jnp.bfloat16), w2_ref[...],
                 preferred_element_type=jnp.float32) + b2_ref[...]
    h2 = _lwta_pair(h2, even_lane)

    out = jnp.dot(h2.astype(jnp.bfloat16), w3_ref[...],
                  preferred_element_type=jnp.float32) + b3_ref[...]
    out_ref[...] = out.astype(out_ref.dtype)                  # bf16 logits, lane-dense


def mnist_lwta_net(x, params, num_classes=10, batch_tile=256):
    w1, b1, w2, b2, w3, b3 = params
    batch = x.shape[0]
    in_f = w1.shape[0]          # 784
    hidden = w1.shape[1]        # 256
    out_pad = w3.shape[1]       # 128

    # Batch tile: multiple of 8 sublanes, capped by the actual batch.
    tb = min(batch_tile, max(batch, 8))
    tb = max(8, (tb // 8) * 8)
    b_pad = pl.cdiv(batch, tb) * tb
    if b_pad != batch:
        x = jnp.pad(x, ((0, b_pad - batch), (0, 0)))
    num_tiles = b_pad // tb

    flops = 2 * b_pad * (in_f * hidden + hidden * hidden + hidden * out_pad)
    bytes_accessed = (b_pad * in_f * 4                       # x (f32 in)
                      + (w1.size + w2.size + w3.size) * 2    # bf16 weights (resident)
                      + (b1.size + b2.size + b3.size) * 4    # f32 biases
                      + b_pad * out_pad * 2)                 # bf16 logits out

    out_padded = pl.pallas_call(
        mlp_lwta_kernel,
        out_shape=jax.ShapeDtypeStruct((b_pad, out_pad), jnp.bfloat16),
        grid=(num_tiles,),
        in_specs=[
            pl.BlockSpec((tb, in_f), lambda i: (i, 0)),        # x: tiled over batch
            pl.BlockSpec((in_f, hidden), lambda i: (0, 0)),    # w1: VMEM-resident
            pl.BlockSpec((1, hidden), lambda i: (0, 0)),       # b1
            pl.BlockSpec((hidden, hidden), lambda i: (0, 0)),  # w2
            pl.BlockSpec((1, hidden), lambda i: (0, 0)),       # b2
            pl.BlockSpec((hidden, out_pad), lambda i: (0, 0)), # w3 (N padded to 128)
            pl.BlockSpec((1, out_pad), lambda i: (0, 0)),      # b3
        ],
        out_specs=pl.BlockSpec((tb, out_pad), lambda i: (i, 0)),
        compiler_params=pltpu.CompilerParams(
            dimension_semantics=("parallel",)),                # v7x: shard tiles across TCs
        cost_estimate=pl.CostEstimate(flops=flops, transcendentals=0,
                                      bytes_accessed=bytes_accessed),
    )(x, w1, b1, w2, b2, w3, b3)

    return out_padded[:batch, :num_classes]


def init_params(key, in_features=IN_FEATURES, hidden_size=256, num_classes=10):
    """nn.Linear-style init (U(-1/sqrt(fan_in), 1/sqrt(fan_in))), then:
       - w3 / b3 N-dim zero-padded num_classes -> 128 (lane-dense output tile),
       - weights stored as bf16 MXU operands (biases stay f32)."""
    ks = jax.random.split(key, 6)

    def linear(kw, kb, fan_in, fan_out):
        bound = 1.0 / np.sqrt(fan_in)
        w = jax.random.uniform(kw, (fan_in, fan_out), jnp.float32, -bound, bound)
        b = jax.random.uniform(kb, (1, fan_out), jnp.float32, -bound, bound)
        return w, b

    w1, b1 = linear(ks[0], ks[1], in_features, hidden_size)
    w2, b2 = linear(ks[2], ks[3], hidden_size, hidden_size)
    w3, b3 = linear(ks[4], ks[5], hidden_size, num_classes)

    # NOTE: pad regions must stay zero if these params are ever retrained/reloaded.
    w3 = jnp.pad(w3, ((0, 0), (0, OUT_PAD - num_classes)))
    b3 = jnp.pad(b3, ((0, 0), (0, OUT_PAD - num_classes)))

    return (w1.astype(jnp.bfloat16), b1,
            w2.astype(jnp.bfloat16), b2,
            w3.astype(jnp.bfloat16), b3)


def reference_forward(x, params, num_classes=10):
    """Pure-JAX reference mirroring the kernel's precision (bf16 operands, f32 accum,
    bf16 logits)."""
    w1, b1, w2, b2, w3, b3 = params
    x_bf = x.astype(jnp.bfloat16)

    def lwta(h, window=2):
        b, f = h.shape
        a = h.reshape(b, f // window, window)
        mx = a.max(axis=-1, keepdims=True)
        return jnp.where(a == mx, a, 0.0).reshape(b, f)

    h = jnp.dot(x_bf, w1, preferred_element_type=jnp.float32) + b1
    h = lwta(h)
    h = jnp.dot(h.astype(jnp.bfloat16), w2, preferred_element_type=jnp.float32) + b2
    h = lwta(h)
    out = jnp.dot(h.astype(jnp.bfloat16), w3, preferred_element_type=jnp.float32) + b3
    return out.astype(jnp.bfloat16)[:, :num_classes]


if __name__ == "__main__":
    key = jax.random.PRNGKey(0)
    kp, kx = jax.random.split(key)

    batch = 8
    hidden_size = 256
    num_classes = 10

    params = init_params(kp, hidden_size=hidden_size, num_classes=num_classes)
    # Forward expects already-flattened MNIST images: (batch, 28*28), f32.
    x = jax.random.normal(kx, (batch, 28 * 28), jnp.float32)

    out = mnist_lwta_net(x, params, num_classes=num_classes)
    out = jax.block_until_ready(out)

    ref = reference_forward(x, params, num_classes=num_classes)
    assert out.shape == (batch, num_classes)
    np.testing.assert_allclose(np.asarray(out, dtype=np.float32),
                               np.asarray(ref, dtype=np.float32),
                               rtol=2e-2, atol=2e-2)

    print("KERNEL_OK")
</pallas_src>

<mosaic_0001>
module attributes {stable_mosaic.version = 11 : i64} {
  func.func @mlp_lwta_kernel(%arg0: i32, %arg1: memref<8x784xf32, #tpu.memory_space<vmem>>, %arg2: memref<784x256xbf16, #tpu.memory_space<vmem>>, %arg3: memref<1x256xf32, #tpu.memory_space<vmem>>, %arg4: memref<256x256xbf16, #tpu.memory_space<vmem>>, %arg5: memref<1x256xf32, #tpu.memory_space<vmem>>, %arg6: memref<256x128xbf16, #tpu.memory_space<vmem>>, %arg7: memref<1x128xf32, #tpu.memory_space<vmem>>, %arg8: memref<8x128xbf16, #tpu.memory_space<vmem>>) attributes {dimension_semantics = [#tpu.dimension_semantics<parallel>], iteration_bounds = array<i64: 1>, scalar_prefetch = 0 : i64, scratch_operands = 0 : i64, tpu.core_type = #tpu.core_type<tc>, window_params = [{transform_indices = @transform_0, window_bounds = array<i64: 8, 784>}, {pipeline_mode = #tpu.pipeline_mode<synchronous>, transform_indices = @transform_1, window_bounds = array<i64: 784, 256>}, {pipeline_mode = #tpu.pipeline_mode<synchronous>, transform_indices = @transform_2, window_bounds = array<i64: 1, 256>}, {pipeline_mode = #tpu.pipeline_mode<synchronous>, transform_indices = @transform_3, window_bounds = array<i64: 256, 256>}, {pipeline_mode = #tpu.pipeline_mode<synchronous>, transform_indices = @transform_4, window_bounds = array<i64: 1, 256>}, {pipeline_mode = #tpu.pipeline_mode<synchronous>, transform_indices = @transform_5, window_bounds = array<i64: 256, 128>}, {pipeline_mode = #tpu.pipeline_mode<synchronous>, transform_indices = @transform_6, window_bounds = array<i64: 1, 128>}, {transform_indices = @transform_7, window_bounds = array<i64: 8, 128>}]} {
    %c0 = arith.constant 0 : index
    %c0_0 = arith.constant 0 : index
    %0 = vector.load %arg1[%c0, %c0_0] : memref<8x784xf32, #tpu.memory_space<vmem>>, vector<8x784xf32>
    %1 = arith.truncf %0 : vector<8x784xf32> to vector<8x784xbf16>
    %2 = tpu.iota {dimensions = array<i32: 1>} : vector<1x256xi32>
    %c1_i32 = arith.constant 1 : i32
    %3 = vector.broadcast %c1_i32 : i32 to vector<1x256xi32>
    %4 = arith.andi %2, %3 : vector<1x256xi32>
    %c0_i32 = arith.constant 0 : i32
    %5 = vector.broadcast %c0_i32 : i32 to vector<1x256xi32>
    %6 = arith.cmpi eq, %4, %5 : vector<1x256xi32>
    %c0_1 = arith.constant 0 : index
    %c0_2 = arith.constant 0 : index
    %7 = vector.load %arg2[%c0_1, %c0_2] : memref<784x256xbf16, #tpu.memory_space<vmem>>, vector<784x256xbf16>
    %cst = arith.constant dense<0.000000e+00> : vector<8x256xf32>
    %8 = tpu.matmul %1, %7, %cst {dimension_numbers = #tpu.dot_dimension_numbers<[1], [0], [0], [1], [0, 0, 1, 1], [], []>} : vector<8x784xbf16>, vector<784x256xbf16>, vector<8x256xf32> -> vector<8x256xf32>
    %c0_3 = arith.constant 0 : index
    %c0_4 = arith.constant 0 : index
    %9 = vector.load %arg3[%c0_3, %c0_4] : memref<1x256xf32, #tpu.memory_space<vmem>>, vector<1x256xf32>
    %10 = vector.broadcast %9 : vector<1x256xf32> to vector<8x256xf32>
    %11 = arith.addf %8, %10 : vector<8x256xf32>
    %c255_i32 = arith.constant 255 : i32
    %12 = tpu.dynamic_rotate %11 by %c255_i32 dim 1 : vector<8x256xf32>, i32 -> vector<8x256xf32>
    %c1_i32_5 = arith.constant 1 : i32
    %13 = tpu.dynamic_rotate %11 by %c1_i32_5 dim 1 : vector<8x256xf32>, i32 -> vector<8x256xf32>
    %14 = vector.shape_cast %6 : vector<1x256xi1> to vector<1x256xi1>
    %15 = vector.broadcast %14 : vector<1x256xi1> to vector<8x256xi1>
    %16 = arith.select %15, %12, %13 : vector<8x256xi1>, vector<8x256xf32>
    %17 = arith.cmpf oge, %11, %16 : vector<8x256xf32>
    %cst_6 = arith.constant 0.000000e+00 : f32
    %18 = vector.broadcast %cst_6 : f32 to vector<8x256xf32>
    %19 = arith.select %17, %11, %18 : vector<8x256xi1>, vector<8x256xf32>
    %20 = arith.truncf %19 : vector<8x256xf32> to vector<8x256xbf16>
    %c0_7 = arith.constant 0 : index
    %c0_8 = arith.constant 0 : index
    %21 = vector.load %arg4[%c0_7, %c0_8] : memref<256x256xbf16, #tpu.memory_space<vmem>>, vector<256x256xbf16>
    %cst_9 = arith.constant dense<0.000000e+00> : vector<8x256xf32>
    %22 = tpu.matmul %20, %21, %cst_9 {dimension_numbers = #tpu.dot_dimension_numbers<[1], [0], [0], [1], [0, 0, 1, 1], [], []>} : vector<8x256xbf16>, vector<256x256xbf16>, vector<8x256xf32> -> vector<8x256xf32>
    %c0_10 = arith.constant 0 : index
    %c0_11 = arith.constant 0 : index
    %23 = vector.load %arg5[%c0_10, %c0_11] : memref<1x256xf32, #tpu.memory_space<vmem>>, vector<1x256xf32>
    %24 = vector.broadcast %23 : vector<1x256xf32> to vector<8x256xf32>
    %25 = arith.addf %22, %24 : vector<8x256xf32>
    %c255_i32_12 = arith.constant 255 : i32
    %26 = tpu.dynamic_rotate %25 by %c255_i32_12 dim 1 : vector<8x256xf32>, i32 -> vector<8x256xf32>
    %c1_i32_13 = arith.constant 1 : i32
    %27 = tpu.dynamic_rotate %25 by %c1_i32_13 dim 1 : vector<8x256xf32>, i32 -> vector<8x256xf32>
    %28 = vector.shape_cast %6 : vector<1x256xi1> to vector<1x256xi1>
    %29 = vector.broadcast %28 : vector<1x256xi1> to vector<8x256xi1>
    %30 = arith.select %29, %26, %27 : vector<8x256xi1>, vector<8x256xf32>
    %31 = arith.cmpf oge, %25, %30 : vector<8x256xf32>
    %cst_14 = arith.constant 0.000000e+00 : f32
    %32 = vector.broadcast %cst_14 : f32 to vector<8x256xf32>
    %33 = arith.select %31, %25, %32 : vector<8x256xi1>, vector<8x256xf32>
    %34 = arith.truncf %33 : vector<8x256xf32> to vector<8x256xbf16>
    %c0_15 = arith.constant 0 : index
    %c0_16 = arith.constant 0 : index
    %35 = vector.load %arg6[%c0_15, %c0_16] : memref<256x128xbf16, #tpu.memory_space<vmem>>, vector<256x128xbf16>
    %cst_17 = arith.constant dense<0.000000e+00> : vector<8x128xf32>
    %36 = tpu.matmul %34, %35, %cst_17 {dimension_numbers = #tpu.dot_dimension_numbers<[1], [0], [0], [1], [0, 0, 1, 1], [], []>} : vector<8x256xbf16>, vector<256x128xbf16>, vector<8x128xf32> -> vector<8x128xf32>
    %c0_18 = arith.constant 0 : index
    %c0_19 = arith.constant 0 : index
    %37 = vector.load %arg7[%c0_18, %c0_19] : memref<1x128xf32, #tpu.memory_space<vmem>>, vector<1x128xf32>
    %38 = vector.broadcast %37 : vector<1x128xf32> to vector<8x128xf32>
    %39 = arith.addf %36, %38 : vector<8x128xf32>
    %40 = arith.truncf %39 : vector<8x128xf32> to vector<8x128xbf16>
    %c0_20 = arith.constant 0 : index
    %c0_21 = arith.constant 0 : index
    %41 = vector.load %arg8[%c0_20, %c0_21] : memref<8x128xbf16, #tpu.memory_space<vmem>>, vector<8x128xbf16>
    tpu.vector_store %arg8[%c0_20, %c0_21], %40 {strides = array<i32>} : memref<8x128xbf16, #tpu.memory_space<vmem>>, vector<8x128xbf16>,
    return
  }
  func.func @transform_0(%arg0: i32) -> (i32, i32) {
    %c0_i32 = arith.constant 0 : i32
    %c0_i32_0 = arith.constant 0 : i32
    return %arg0, %c0_i32 : i32, i32
  }
  func.func @transform_1(%arg0: i32) -> (i32, i32) {
    %c0_i32 = arith.constant 0 : i32
    %c0_i32_0 = arith.constant 0 : i32
    %c0_i32_1 = arith.constant 0 : i32
    return %c0_i32, %c0_i32_0 : i32, i32
  }
  func.func @transform_2(%arg0: i32) -> (i32, i32) {
    %c0_i32 = arith.constant 0 : i32
    %c0_i32_0 = arith.constant 0 : i32
    %c0_i32_1 = arith.constant 0 : i32
    return %c0_i32, %c0_i32_0 : i32, i32
  }
  func.func @transform_3(%arg0: i32) -> (i32, i32) {
    %c0_i32 = arith.constant 0 : i32
    %c0_i32_0 = arith.constant 0 : i32
    %c0_i32_1 = arith.constant 0 : i32
    return %c0_i32, %c0_i32_0 : i32, i32
  }
  func.func @transform_4(%arg0: i32) -> (i32, i32) {
    %c0_i32 = arith.constant 0 : i32
    %c0_i32_0 = arith.constant 0 : i32
    %c0_i32_1 = arith.constant 0 : i32
    return %c0_i32, %c0_i32_0 : i32, i32
  }
  func.func @transform_5(%arg0: i32) -> (i32, i32) {
    %c0_i32 = arith.constant 0 : i32
    %c0_i32_0 = arith.constant 0 : i32
    %c0_i32_1 = arith.constant 0 : i32
    return %c0_i32, %c0_i32_0 : i32, i32
  }
  func.func @transform_6(%arg0: i32) -> (i32, i32) {
    %c0_i32 = arith.constant 0 : i32
    %c0_i32_0 = arith.constant 0 : i32
    %c0_i32_1 = arith.constant 0 : i32
    return %c0_i32, %c0_i32_0 : i32, i32
  }
  func.func @transform_7(%arg0: i32) -> (i32, i32) {
    %c0_i32 = arith.constant 0 : i32
    %c0_i32_0 = arith.constant 0 : i32
    return %arg0, %c0_i32 : i32, i32
  }
}

</mosaic_0001>

<llo_original>
// kernel: tpu_custom_call.1
$region0: #{tpu_custom_call.1}
  #allocation0 [shape = 'u32[]', space=smem, size = 0x4, offset = 0x4, fixed_abs, tag = 'smem constant byte address 0x4 - core index']
  #allocation1 [shape = 'u32[144,128]{1,0:T(1,128)}', space=vmem, size = 0x12000, scoped, tag = 'internal scratch']
  %s0 = inlined_call_operand.hbm [shape: f32[8,784], index: 0, kind: input, shape index: {}]
  %s1 = inlined_call_operand.hbm [shape: bf16[784,256], index: 1, kind: input, shape index: {}]
  %s2 = inlined_call_operand.vmem [shape: f32[1,256], index: 2, kind: input, shape index: {}]
  %s3 = inlined_call_operand.hbm [shape: bf16[256,256], index: 3, kind: input, shape index: {}]
  %s4 = inlined_call_operand.vmem [shape: f32[1,256], index: 4, kind: input, shape index: {}]
  %s5 = inlined_call_operand.hbm [shape: bf16[256,128], index: 5, kind: input, shape index: {}]
  %s6 = inlined_call_operand.vmem [shape: f32[1,128], index: 6, kind: input, shape index: {}]
  %s7 = inlined_call_operand.hbm [shape: bf16[8,128], index: 7, kind: output, shape index: {}]
  %s8 = sld [smem:[#allocation0]]
  $region54: #{tpu_custom_call.1} parent=0
    _
  %s10 = ssub.s32 1, %s8
  %s11 = scalar_select 0, %s10, %s8
  $region1: #{tpu_custom_call.1} parent=0
    #allocation2 [shape = 'u8[28672]{0}', space=vmem, size = 0x7000, scoped, tag = 'input window, operand 0, single buffered']
    #allocation3 [shape = 's32[1]{0}', space=sflag, size = 0x4, scoped, tag = 'scoped memory for tpu_custom_call.1']
    #allocation4 [shape = 's32[1]{0}', space=sflag, size = 0x4, scoped, tag = 'scoped memory for tpu_custom_call.1']
    #allocation5 [shape = 'u8[401408]{0}', space=vmem, size = 0x62000, scoped, tag = 'input window, operand 1, single buffered']
    #allocation6 [shape = 's32[1]{0}', space=sflag, size = 0x4, scoped, tag = 'scoped memory for tpu_custom_call.1']
    #allocation7 [shape = 'u8[131072]{0}', space=vmem, size = 0x20000, scoped, tag = 'input window, operand 3, single buffered']
    #allocation8 [shape = 'u8[65536]{0}', space=vmem, size = 0x10000, scoped, tag = 'input window, operand 5, single buffered']
    #allocation9 [shape = 's32[1]{0}', space=sflag, size = 0x4, scoped, tag = 'scoped memory for tpu_custom_call.1']
    #allocation10 [shape = 'u8[2048]{0}', space=vmem, size = 0x800, scoped, tag = 'output window, operand 0, single buffered']
    %12 = vsyncpa [#allocation3], 0
    %13 = vsyncpa [#allocation6], 0
    %14 = vsyncpa [#allocation9], 0
    %15 = vsyncpa [#allocation4], 0
    // Predicated region
    $region2: #{tpu_custom_call.1} parent=1 // pred_check
      _
    $region3: #{tpu_custom_call.1} parent=1 // pred_check_branch
      %17 = sbr.rel (0) target = $region5
    $region4: #{tpu_custom_call.1} parent=1 // pred_region
      %s19 = ssub.s32 896, 896
      %20 = vsyncadd [#allocation3], %s19
      %s22 = sshll.u32 [#allocation2], 4
      %s23 = int_to_ptr.vmem [resolvable:$true] %s22
      %25 = dma.hbm_to_vmem [thread:$0]  %s0, 896, %s23, [#allocation3]
    $region5: #{tpu_custom_call.1} parent=1 // pred_fallthru
      _
    // Predicated region
    $region6: #{tpu_custom_call.1} parent=1 // pred_check
      _
    $region7: #{tpu_custom_call.1} parent=1 // pred_check_branch
      %27 = sbr.rel (0) target = $region9
    $region8: #{tpu_custom_call.1} parent=1 // pred_region
      %s29 = ssub.s32 12544, 12544
      %30 = vsyncadd [#allocation6], %s29
      %s31 = sshll.u32 [#allocation5], 4
      %s32 = int_to_ptr.vmem [resolvable:$true] %s31
      %37 = dma.hbm_to_vmem [thread:$0]  %s1, 12544, %s32, [#allocation6], 128, 128, 8
    $region9: #{tpu_custom_call.1} parent=1 // pred_fallthru
      _
    // Predicated region
    $region10: #{tpu_custom_call.1} parent=1 // pred_check
      _
    $region11: #{tpu_custom_call.1} parent=1 // pred_check_branch
      %39 = sbr.rel (0) target = $region13
    $region12: #{tpu_custom_call.1} parent=1 // pred_region
      _
    $region13: #{tpu_custom_call.1} parent=1 // pred_fallthru
      _
    // Predicated region
    $region14: #{tpu_custom_call.1} parent=1 // pred_check
      _
    $region15: #{tpu_custom_call.1} parent=1 // pred_check_branch
      %41 = sbr.rel (0) target = $region17
    $region16: #{tpu_custom_call.1} parent=1 // pred_region
      %s43 = ssub.s32 4096, 4096
      %44 = vsyncadd [#allocation6], %s43
      %s45 = sshll.u32 [#allocation7], 4
      %s46 = int_to_ptr.vmem [resolvable:$true] %s45
      %51 = dma.hbm_to_vmem [thread:$0]  %s3, 4096, %s46, [#allocation6], 128, 128, 8
    $region17: #{tpu_custom_call.1} parent=1 // pred_fallthru
      _
    // Predicated region
    $region18: #{tpu_custom_call.1} parent=1 // pred_check
      _
    $region19: #{tpu_custom_call.1} parent=1 // pred_check_branch
      %53 = sbr.rel (0) target = $region21
    $region20: #{tpu_custom_call.1} parent=1 // pred_region
      _
    $region21: #{tpu_custom_call.1} parent=1 // pred_fallthru
      _
    // Predicated region
    $region22: #{tpu_custom_call.1} parent=1 // pred_check
      _
    $region23: #{tpu_custom_call.1} parent=1 // pred_check_branch
      %55 = sbr.rel (0) target = $region25
    $region24: #{tpu_custom_call.1} parent=1 // pred_region
      %s57 = ssub.s32 2048, 2048
      %58 = vsyncadd [#allocation9], %s57
      %s59 = sshll.u32 [#allocation8], 4
      %s60 = int_to_ptr.vmem [resolvable:$true] %s59
      %65 = dma.hbm_to_vmem [thread:$0]  %s5, 2048, %s60, [#allocation9], 64, 64, 4
    $region25: #{tpu_custom_call.1} parent=1 // pred_fallthru
      _
    // Predicated region
    $region26: #{tpu_custom_call.1} parent=1 // pred_check
      _
    $region27: #{tpu_custom_call.1} parent=1 // pred_check_branch
      %67 = sbr.rel (0) target = $region29
    $region28: #{tpu_custom_call.1} parent=1 // pred_region
      _
    $region29: #{tpu_custom_call.1} parent=1 // pred_fallthru
      _
    // Predicated region
    $region30: #{tpu_custom_call.1} parent=1 // pred_check
      _
    $region31: #{tpu_custom_call.1} parent=1 // pred_check_branch
      %69 = sbr.rel (0) target = $region33
    $region32: #{tpu_custom_call.1} parent=1 // pred_region
      %70 = dma.done [#allocation3], 896
    $region33: #{tpu_custom_call.1} parent=1 // pred_fallthru
      _
    // Predicated region
    $region34: #{tpu_custom_call.1} parent=1 // pred_check
      _
    $region35: #{tpu_custom_call.1} parent=1 // pred_check_branch
      %72 = sbr.rel (0) target = $region37
    $region36: #{tpu_custom_call.1} parent=1 // pred_region
      %73 = dma.done [#allocation6], 12544
    $region37: #{tpu_custom_call.1} parent=1 // pred_fallthru
      _
    // Predicated region
    $region38: #{tpu_custom_call.1} parent=1 // pred_check
      _
    $region39: #{tpu_custom_call.1} parent=1 // pred_check_branch
      %75 = sbr.rel (0) target = $region41
    $region40: #{tpu_custom_call.1} parent=1 // pred_region
      %76 = dma.done [#allocation6], 4096
    $region41: #{tpu_custom_call.1} parent=1 // pred_fallthru
      _
    // Predicated region
    $region42: #{tpu_custom_call.1} parent=1 // pred_check
      _
    $region43: #{tpu_custom_call.1} parent=1 // pred_check_branch
      %78 = sbr.rel (0) target = $region45
    $region44: #{tpu_custom_call.1} parent=1 // pred_region
      %79 = dma.done [#allocation9], 2048
    $region45: #{tpu_custom_call.1} parent=1 // pred_fallthru
      _
    %v81 = vld [vmem:[#allocation2] sm:$0xff]
    %v82 = vld [vmem:[#allocation2 + $0x8] sm:$0xff]
    %v83 = vld [vmem:[#allocation2 + $0x10] sm:$0xff]
    %v84 = vld [vmem:[#allocation2 + $0x18] sm:$0xff]
    %v85 = vld [vmem:[#allocation2 + $0x20] sm:$0xff]
    %v86 = vld [vmem:[#allocation2 + $0x28] sm:$0xff]
    %v87 = vld [vmem:[#allocation2 + $0x30] sm:$0xff]
    %v88 = vpack.c.bf16 %v81, %v81
    %v89 = vpack.c.bf16 %v82, %v82
    %v90 = vpack.c.bf16 %v83, %v83
    %v91 = vpack.c.bf16 %v84, %v84
    %v92 = vpack.c.bf16 %v85, %v85
    %v93 = vpack.c.bf16 %v86, %v86
    %v94 = vpack.c.bf16 %v87, %v87
    %v95 = vlaneseq
    %v96 = vand.u32 %v95, 127
    %v97 = vadd.s32 %v96, 128
    %v98 = vand.u32 %v96, 1
    %v99 = vand.u32 %v97, 1
    %vm100 = vcmp.eq.s32.totalorder %v98, 0
    %vm101 = vcmp.eq.s32.totalorder %v99, 0
    %v102 = vld [vmem:[#allocation5] sm:$0xff]
    %v103 = vld [vmem:[#allocation5 + $0x8] sm:$0xff]
    %v104 = vld [vmem:[#allocation5 + $0x10] sm:$0xff]
    %v105 = vld [vmem:[#allocation5 + $0x18] sm:$0xff]
    %v106 = vld [vmem:[#allocation5 + $0x20] sm:$0xff]
    %v107 = vld [vmem:[#allocation5 + $0x28] sm:$0xff]
    %v108 = vld [vmem:[#allocation5 + $0x30] sm:$0xff]
    %v109 = vld [vmem:[#allocation5 + $0x38] sm:$0xff]
    %v110 = vld [vmem:[#allocation5 + $0x40] sm:$0xff]
    %v111 = vld [vmem:[#allocation5 + $0x48] sm:$0xff]
    %v112 = vld [vmem:[#allocation5 + $0x50] sm:$0xff]
    %v113 = vld [vmem:[#allocation5 + $0x58] sm:$0xff]
    %v114 = vld [vmem:[#allocation5 + $0x60] sm:$0xff]
    %v115 = vld [vmem:[#allocation5 + $0x68] sm:$0xff]
    %v116 = vld [vmem:[#allocation5 + $0x70] sm:$0xff]
    %v117 = vld [vmem:[#allocation5 + $0x78] sm:$0xff]
    %v118 = vld [vmem:[#allocation5 + $0x80] sm:$0xff]
    %v119 = vld [vmem:[#allocation5 + $0x88] sm:$0xff]
    %v120 = vld [vmem:[#allocation5 + $0x90] sm:$0xff]
    %v121 = vld [vmem:[#allocation5 + $0x98] sm:$0xff]
    %v122 = vld [vmem:[#allocation5 + $0xa0] sm:$0xff]
    %v123 = vld [vmem:[#allocation5 + $0xa8] sm:$0xff]
    %v124 = vld [vmem:[#allocation5 + $0xb0] sm:$0xff]
    %v125 = vld [vmem:[#allocation5 + $0xb8] sm:$0xff]
    %v126 = vld [vmem:[#allocation5 + $0xc0] sm:$0xff]
    %v127 = vld [vmem:[#allocation5 + $0xc8] sm:$0xff]
    %v128 = vld [vmem:[#allocation5 + $0xd0] sm:$0xff]
    %v129 = vld [vmem:[#allocation5 + $0xd8] sm:$0xff]
    %v130 = vld [vmem:[#allocation5 + $0xe0] sm:$0xff]
    %v131 = vld [vmem:[#allocation5 + $0xe8] sm:$0xff]
    %v132 = vld [vmem:[#allocation5 + $0xf0] sm:$0xff]
    %v133 = vld [vmem:[#allocation5 + $0xf8] sm:$0xff]
    %v134 = vld [vmem:[#allocation5 + $0x100] sm:$0xff]
    %v135 = vld [vmem:[#allocation5 + $0x108] sm:$0xff]
    %v136 = vld [vmem:[#allocation5 + $0x110] sm:$0xff]
    %v137 = vld [vmem:[#allocation5 + $0x118] sm:$0xff]
    %v138 = vld [vmem:[#allocation5 + $0x120] sm:$0xff]
    %v139 = vld [vmem:[#allocation5 + $0x128] sm:$0xff]
    %v140 = vld [vmem:[#allocation5 + $0x130] sm:$0xff]
    %v141 = vld [vmem:[#allocation5 + $0x138] sm:$0xff]
    %v142 = vld [vmem:[#allocation5 + $0x140] sm:$0xff]
    %v143 = vld [vmem:[#allocation5 + $0x148] sm:$0xff]
    %v144 = vld [vmem:[#allocation5 + $0x150] sm:$0xff]
    %v145 = vld [vmem:[#allocation5 + $0x158] sm:$0xff]
    %v146 = vld [vmem:[#allocation5 + $0x160] sm:$0xff]
    %v147 = vld [vmem:[#allocation5 + $0x168] sm:$0xff]
    %v148 = vld [vmem:[#allocation5 + $0x170] sm:$0xff]
    %v149 = vld [vmem:[#allocation5 + $0x178] sm:$0xff]
    %v150 = vld [vmem:[#allocation5 + $0x180] sm:$0xff]
    %v151 = vld [vmem:[#allocation5 + $0x188] sm:$0xff]
    %v152 = vld [vmem:[#allocation5 + $0x190] sm:$0xff]
    %v153 = vld [vmem:[#allocation5 + $0x198] sm:$0xff]
    %v154 = vld [vmem:[#allocation5 + $0x1a0] sm:$0xff]
    %v155 = vld [vmem:[#allocation5 + $0x1a8] sm:$0xff]
    %v156 = vld [vmem:[#allocation5 + $0x1b0] sm:$0xff]
    %v157 = vld [vmem:[#allocation5 + $0x1b8] sm:$0xff]
    %v158 = vld [vmem:[#allocation5 + $0x1c0] sm:$0xff]
    %v159 = vld [vmem:[#allocation5 + $0x1c8] sm:$0xff]
    %v160 = vld [vmem:[#allocation5 + $0x1d0] sm:$0xff]
    %v161 = vld [vmem:[#allocation5 + $0x1d8] sm:$0xff]
    %v162 = vld [vmem:[#allocation5 + $0x1e0] sm:$0xff]
    %v163 = vld [vmem:[#allocation5 + $0x1e8] sm:$0xff]
    %v164 = vld [vmem:[#allocation5 + $0x1f0] sm:$0xff]
    %v165 = vld [vmem:[#allocation5 + $0x1f8] sm:$0xff]
    %v166 = vld [vmem:[#allocation5 + $0x200] sm:$0xff]
    %v167 = vld [vmem:[#allocation5 + $0x208] sm:$0xff]
    %v168 = vld [vmem:[#allocation5 + $0x210] sm:$0xff]
    %v169 = vld [vmem:[#allocation5 + $0x218] sm:$0xff]
    %v170 = vld [vmem:[#allocation5 + $0x220] sm:$0xff]
    %v171 = vld [vmem:[#allocation5 + $0x228] sm:$0xff]
    %v172 = vld [vmem:[#allocation5 + $0x230] sm:$0xff]
    %v173 = vld [vmem:[#allocation5 + $0x238] sm:$0xff]
    %v174 = vld [vmem:[#allocation5 + $0x240] sm:$0xff]
    %v175 = vld [vmem:[#allocation5 + $0x248] sm:$0xff]
    %v176 = vld [vmem:[#allocation5 + $0x250] sm:$0xff]
    %v177 = vld [vmem:[#allocation5 + $0x258] sm:$0xff]
    %v178 = vld [vmem:[#allocation5 + $0x260] sm:$0xff]
    %v179 = vld [vmem:[#allocation5 + $0x268] sm:$0xff]
    %v180 = vld [vmem:[#allocation5 + $0x270] sm:$0xff]
    %v181 = vld [vmem:[#allocation5 + $0x278] sm:$0xff]
    %v182 = vld [vmem:[#allocation5 + $0x280] sm:$0xff]
    %v183 = vld [vmem:[#allocation5 + $0x288] sm:$0xff]
    %v184 = vld [vmem:[#allocation5 + $0x290] sm:$0xff]
    %v185 = vld [vmem:[#allocation5 + $0x298] sm:$0xff]
    %v186 = vld [vmem:[#allocation5 + $0x2a0] sm:$0xff]
    %v187 = vld [vmem:[#allocation5 + $0x2a8] sm:$0xff]
    %v188 = vld [vmem:[#allocation5 + $0x2b0] sm:$0xff]
    %v189 = vld [vmem:[#allocation5 + $0x2b8] sm:$0xff]
    %v190 = vld [vmem:[#allocation5 + $0x2c0] sm:$0xff]
    %v191 = vld [vmem:[#allocation5 + $0x2c8] sm:$0xff]
    %v192 = vld [vmem:[#allocation5 + $0x2d0] sm:$0xff]
    %v193 = vld [vmem:[#allocation5 + $0x2d8] sm:$0xff]
    %v194 = vld [vmem:[#allocation5 + $0x2e0] sm:$0xff]
    %v195 = vld [vmem:[#allocation5 + $0x2e8] sm:$0xff]
    %v196 = vld [vmem:[#allocation5 + $0x2f0] sm:$0xff]
    %v197 = vld [vmem:[#allocation5 + $0x2f8] sm:$0xff]
    %v198 = vld [vmem:[#allocation5 + $0x300] sm:$0xff]
    %v199 = vld [vmem:[#allocation5 + $0x308] sm:$0xff]
    %v200 = vld [vmem:[%s2] sm:$0x3]
    %v202 = vlaneseq
    %v203 = vshrl.u32 %v202, 7
    %v204 = vsub.s32 0, %v203
    %v205 = vrot.slane %v200, %v204
    %v206 = vlaneseq
    %v207 = vshrl.u32 %v206, 7
    %v208 = vsub.s32 1, %v207
    %v209 = vrot.slane %v200, %v208
    %v310 = vunpack.c.l.b16 %v102
    %v311 = vunpack.c.h.b16 %v102
    %v312 = vunpack.c.l.b16 %v103
    %v313 = vunpack.c.h.b16 %v103
    %v314 = vunpack.c.l.b16 %v104
    %v315 = vunpack.c.h.b16 %v104
    %v316 = vunpack.c.l.b16 %v105
    %v317 = vunpack.c.h.b16 %v105
    %v318 = vunpack.c.l.b16 %v106
    %v319 = vunpack.c.h.b16 %v106
    %v320 = vunpack.c.l.b16 %v107
    %v321 = vunpack.c.h.b16 %v107
    %v322 = vunpack.c.l.b16 %v108
    %v323 = vunpack.c.h.b16 %v108
    %v324 = vunpack.c.l.b16 %v109
    %v325 = vunpack.c.h.b16 %v109
    %v326 = vunpack.c.l.b16 %v110
    %v327 = vunpack.c.h.b16 %v110
    %v328 = vunpack.c.l.b16 %v111
    %v329 = vunpack.c.h.b16 %v111
    %v330 = vunpack.c.l.b16 %v112
    %v331 = vunpack.c.h.b16 %v112
    %v332 = vunpack.c.l.b16 %v113
    %v333 = vunpack.c.h.b16 %v113
    %v334 = vunpack.c.l.b16 %v114
    %v335 = vunpack.c.h.b16 %v114
    %v336 = vunpack.c.l.b16 %v115
    %v337 = vunpack.c.h.b16 %v115
    %v338 = vunpack.c.l.b16 %v116
    %v339 = vunpack.c.h.b16 %v116
    %v340 = vunpack.c.l.b16 %v117
    %v341 = vunpack.c.h.b16 %v117
    %v342 = vunpack.c.l.b16 %v118
    %v343 = vunpack.c.h.b16 %v118
    %v344 = vunpack.c.l.b16 %v119
    %v345 = vunpack.c.h.b16 %v119
    %v346 = vunpack.c.l.b16 %v120
    %v347 = vunpack.c.h.b16 %v120
    %v348 = vunpack.c.l.b16 %v121
    %v349 = vunpack.c.h.b16 %v121
    %v350 = vunpack.c.l.b16 %v122
    %v351 = vunpack.c.h.b16 %v122
    %v352 = vunpack.c.l.b16 %v123
    %v353 = vunpack.c.h.b16 %v123
    %v354 = vunpack.c.l.b16 %v124
    %v355 = vunpack.c.h.b16 %v124
    %v356 = vunpack.c.l.b16 %v125
    %v357 = vunpack.c.h.b16 %v125
    %v358 = vunpack.c.l.b16 %v126
    %v359 = vunpack.c.h.b16 %v126
    %v360 = vunpack.c.l.b16 %v127
    %v361 = vunpack.c.h.b16 %v127
    %v362 = vunpack.c.l.b16 %v128
    %v363 = vunpack.c.h.b16 %v128
    %v364 = vunpack.c.l.b16 %v129
    %v365 = vunpack.c.h.b16 %v129
    %v366 = vunpack.c.l.b16 %v130
    %v367 = vunpack.c.h.b16 %v130
    %v368 = vunpack.c.l.b16 %v131
    %v369 = vunpack.c.h.b16 %v131
    %v370 = vunpack.c.l.b16 %v132
    %v371 = vunpack.c.h.b16 %v132
    %v372 = vunpack.c.l.b16 %v133
    %v373 = vunpack.c.h.b16 %v133
    %v374 = vunpack.c.l.b16 %v134
    %v375 = vunpack.c.h.b16 %v134
    %v376 = vunpack.c.l.b16 %v135
    %v377 = vunpack.c.h.b16 %v135
    %v378 = vunpack.c.l.b16 %v136
    %v379 = vunpack.c.h.b16 %v136
    %v380 = vunpack.c.l.b16 %v137
    %v381 = vunpack.c.h.b16 %v137
    %v382 = vunpack.c.l.b16 %v138
    %v383 = vunpack.c.h.b16 %v138
    %v384 = vunpack.c.l.b16 %v139
    %v385 = vunpack.c.h.b16 %v139
    %v386 = vunpack.c.l.b16 %v140
    %v387 = vunpack.c.h.b16 %v140
    %v388 = vunpack.c.l.b16 %v141
    %v389 = vunpack.c.h.b16 %v141
    %v390 = vunpack.c.l.b16 %v142
    %v391 = vunpack.c.h.b16 %v142
    %v392 = vunpack.c.l.b16 %v143
    %v393 = vunpack.c.h.b16 %v143
    %v394 = vunpack.c.l.b16 %v144
    %v395 = vunpack.c.h.b16 %v144
    %v396 = vunpack.c.l.b16 %v145
    %v397 = vunpack.c.h.b16 %v145
    %v398 = vunpack.c.l.b16 %v146
    %v399 = vunpack.c.h.b16 %v146
    %v400 = vunpack.c.l.b16 %v147
    %v401 = vunpack.c.h.b16 %v147
    %v402 = vunpack.c.l.b16 %v148
    %v403 = vunpack.c.h.b16 %v148
    %v404 = vunpack.c.l.b16 %v149
    %v405 = vunpack.c.h.b16 %v149
    %v406 = vunpack.c.l.b16 %v150
    %v407 = vunpack.c.h.b16 %v150
    %v408 = vunpack.c.l.b16 %v151
    %v409 = vunpack.c.h.b16 %v151
    %v410 = vunpack.c.l.b16 %v152
    %v411 = vunpack.c.h.b16 %v152
    %v412 = vunpack.c.l.b16 %v153
    %v413 = vunpack.c.h.b16 %v153
    %v414 = vunpack.c.l.b16 %v154
    %v415 = vunpack.c.h.b16 %v154
    %v416 = vunpack.c.l.b16 %v155
    %v417 = vunpack.c.h.b16 %v155
    %v418 = vunpack.c.l.b16 %v156
    %v419 = vunpack.c.h.b16 %v156
    %v420 = vunpack.c.l.b16 %v157
    %v421 = vunpack.c.h.b16 %v157
    %v422 = vunpack.c.l.b16 %v158
    %v423 = vunpack.c.h.b16 %v158
    %v424 = vunpack.c.l.b16 %v159
    %v425 = vunpack.c.h.b16 %v159
    %v426 = vunpack.c.l.b16 %v160
    %v427 = vunpack.c.h.b16 %v160
    %v428 = vunpack.c.l.b16 %v161
    %v429 = vunpack.c.h.b16 %v161
    %v430 = vunpack.c.l.b16 %v162
    %v431 = vunpack.c.h.b16 %v162
    %v432 = vunpack.c.l.b16 %v163
    %v433 = vunpack.c.h.b16 %v163
    %v434 = vunpack.c.l.b16 %v164
    %v435 = vunpack.c.h.b16 %v164
    %v436 = vunpack.c.l.b16 %v165
    %v437 = vunpack.c.h.b16 %v165
    %v438 = vunpack.c.l.b16 %v166
    %v439 = vunpack.c.h.b16 %v166
    %v440 = vunpack.c.l.b16 %v167
    %v441 = vunpack.c.h.b16 %v167
    %v442 = vunpack.c.l.b16 %v168
    %v443 = vunpack.c.h.b16 %v168
    %v444 = vunpack.c.l.b16 %v169
    %v445 = vunpack.c.h.b16 %v169
    %v446 = vunpack.c.l.b16 %v170
    %v447 = vunpack.c.h.b16 %v170
    %v448 = vunpack.c.l.b16 %v171
    %v449 = vunpack.c.h.b16 %v171
    %v450 = vunpack.c.l.b16 %v172
    %v451 = vunpack.c.h.b16 %v172
    %v452 = vunpack.c.l.b16 %v173
    %v453 = vunpack.c.h.b16 %v173
    %v454 = vunpack.c.l.b16 %v174
    %v455 = vunpack.c.h.b16 %v174
    %v456 = vunpack.c.l.b16 %v175
    %v457 = vunpack.c.h.b16 %v175
    %v458 = vunpack.c.l.b16 %v176
    %v459 = vunpack.c.h.b16 %v176
    %v460 = vunpack.c.l.b16 %v177
    %v461 = vunpack.c.h.b16 %v177
    %v462 = vunpack.c.l.b16 %v178
    %v463 = vunpack.c.h.b16 %v178
    %v464 = vunpack.c.l.b16 %v179
    %v465 = vunpack.c.h.b16 %v179
    %v466 = vunpack.c.l.b16 %v180
    %v467 = vunpack.c.h.b16 %v180
    %v468 = vunpack.c.l.b16 %v181
    %v469 = vunpack.c.h.b16 %v181
    %v470 = vunpack.c.l.b16 %v182
    %v471 = vunpack.c.h.b16 %v182
    %v472 = vunpack.c.l.b16 %v183
    %v473 = vunpack.c.h.b16 %v183
    %v474 = vunpack.c.l.b16 %v184
    %v475 = vunpack.c.h.b16 %v184
    %v476 = vunpack.c.l.b16 %v185
    %v477 = vunpack.c.h.b16 %v185
    %v478 = vunpack.c.l.b16 %v186
    %v479 = vunpack.c.h.b16 %v186
    %v480 = vunpack.c.l.b16 %v187
    %v481 = vunpack.c.h.b16 %v187
    %v482 = vunpack.c.l.b16 %v188
    %v483 = vunpack.c.h.b16 %v188
    %v484 = vunpack.c.l.b16 %v189
    %v485 = vunpack.c.h.b16 %v189
    %v486 = vunpack.c.l.b16 %v190
    %v487 = vunpack.c.h.b16 %v190
    %v488 = vunpack.c.l.b16 %v191
    %v489 = vunpack.c.h.b16 %v191
    %v490 = vunpack.c.l.b16 %v192
    %v491 = vunpack.c.h.b16 %v192
    %v492 = vunpack.c.l.b16 %v193
    %v493 = vunpack.c.h.b16 %v193
    %v494 = vunpack.c.l.b16 %v194
    %v495 = vunpack.c.h.b16 %v194
    %v496 = vunpack.c.l.b16 %v195
    %v497 = vunpack.c.h.b16 %v195
    %v498 = vunpack.c.l.b16 %v196
    %v499 = vunpack.c.h.b16 %v196
    %v500 = vunpack.c.l.b16 %v197
    %v501 = vunpack.c.h.b16 %v197
    %v502 = vunpack.c.l.b16 %v198
    %v503 = vunpack.c.h.b16 %v198
    %v504 = vunpack.c.l.b16 %v199
    %v505 = vunpack.c.h.b16 %v199
    %v506 = vpack.c.b16 %v312, %v310
    %v507 = vpack.c.b16 %v313, %v311
    %v508 = vpack.c.b16 %v316, %v314
    %v509 = vpack.c.b16 %v317, %v315
    %v510 = vpack.c.b16 %v320, %v318
    %v511 = vpack.c.b16 %v321, %v319
    %v512 = vpack.c.b16 %v324, %v322
    %v513 = vpack.c.b16 %v325, %v323
    %v514 = vpack.c.b16 %v328, %v326
    %v515 = vpack.c.b16 %v329, %v327
    %v516 = vpack.c.b16 %v332, %v330
    %v517 = vpack.c.b16 %v333, %v331
    %v518 = vpack.c.b16 %v336, %v334
    %v519 = vpack.c.b16 %v337, %v335
    %v520 = vpack.c.b16 %v340, %v338
    %v521 = vpack.c.b16 %v341, %v339
    %v522 = vpack.c.b16 %v344, %v342
    %v523 = vpack.c.b16 %v345, %v343
    %v524 = vpack.c.b16 %v348, %v346
    %v525 = vpack.c.b16 %v349, %v347
    %v526 = vpack.c.b16 %v352, %v350
    %v527 = vpack.c.b16 %v353, %v351
    %v528 = vpack.c.b16 %v356, %v354
    %v529 = vpack.c.b16 %v357, %v355
    %v530 = vpack.c.b16 %v360, %v358
    %v531 = vpack.c.b16 %v361, %v359
    %v532 = vpack.c.b16 %v364, %v362
    %v533 = vpack.c.b16 %v365, %v363
    %v534 = vpack.c.b16 %v368, %v366
    %v535 = vpack.c.b16 %v369, %v367
    %v536 = vpack.c.b16 %v372, %v370
    %v537 = vpack.c.b16 %v373, %v371
    %v538 = vpack.c.b16 %v376, %v374
    %v539 = vpack.c.b16 %v377, %v375
    %v540 = vpack.c.b16 %v380, %v378
    %v541 = vpack.c.b16 %v381, %v379
    %v542 = vpack.c.b16 %v384, %v382
    %v543 = vpack.c.b16 %v385, %v383
    %v544 = vpack.c.b16 %v388, %v386
    %v545 = vpack.c.b16 %v389, %v387
    %v546 = vpack.c.b16 %v392, %v390
    %v547 = vpack.c.b16 %v393, %v391
    %v548 = vpack.c.b16 %v396, %v394
    %v549 = vpack.c.b16 %v397, %v395
    %v550 = vpack.c.b16 %v400, %v398
    %v551 = vpack.c.b16 %v401, %v399
    %v552 = vpack.c.b16 %v404, %v402
    %v553 = vpack.c.b16 %v405, %v403
    %v554 = vpack.c.b16 %v408, %v406
    %v555 = vpack.c.b16 %v409, %v407
    %v556 = vpack.c.b16 %v412, %v410
    %v557 = vpack.c.b16 %v413, %v411
    %v558 = vpack.c.b16 %v416, %v414
    %v559 = vpack.c.b16 %v417, %v415
    %v560 = vpack.c.b16 %v420, %v418
    %v561 = vpack.c.b16 %v421, %v419
    %v562 = vpack.c.b16 %v424, %v422
    %v563 = vpack.c.b16 %v425, %v423
    %v564 = vpack.c.b16 %v428, %v426
    %v565 = vpack.c.b16 %v429, %v427
    %v566 = vpack.c.b16 %v432, %v430
    %v567 = vpack.c.b16 %v433, %v431
    %v568 = vpack.c.b16 %v436, %v434
    %v569 = vpack.c.b16 %v437, %v435
    %v570 = vpack.c.b16 %v440, %v438
    %v571 = vpack.c.b16 %v441, %v439
    %v572 = vpack.c.b16 %v444, %v442
    %v573 = vpack.c.b16 %v445, %v443
    %v574 = vpack.c.b16 %v448, %v446
    %v575 = vpack.c.b16 %v449, %v447
    %v576 = vpack.c.b16 %v452, %v450
    %v577 = vpack.c.b16 %v453, %v451
    %v578 = vpack.c.b16 %v456, %v454
    %v579 = vpack.c.b16 %v457, %v455
    %v580 = vpack.c.b16 %v460, %v458
    %v581 = vpack.c.b16 %v461, %v459
    %v582 = vpack.c.b16 %v464, %v462
    %v583 = vpack.c.b16 %v465, %v463
    %v584 = vpack.c.b16 %v468, %v466
    %v585 = vpack.c.b16 %v469, %v467
    %v586 = vpack.c.b16 %v472, %v470
    %v587 = vpack.c.b16 %v473, %v471
    %v588 = vpack.c.b16 %v476, %v474
    %v589 = vpack.c.b16 %v477, %v475
    %v590 = vpack.c.b16 %v480, %v478
    %v591 = vpack.c.b16 %v481, %v479
    %v592 = vpack.c.b16 %v484, %v482
    %v593 = vpack.c.b16 %v485, %v483
    %v594 = vpack.c.b16 %v488, %v486
    %v595 = vpack.c.b16 %v489, %v487
    %v596 = vpack.c.b16 %v492, %v490
    %v597 = vpack.c.b16 %v493, %v491
    %v598 = vpack.c.b16 %v496, %v494
    %v599 = vpack.c.b16 %v497, %v495
    %v600 = vpack.c.b16 %v500, %v498
    %v601 = vpack.c.b16 %v501, %v499
    %v602 = vpack.c.b16 %v504, %v502
    %v603 = vpack.c.b16 %v505, %v503
    %vm702 = vcmask 130048
    %v704 = vsel %vm702, %v94, 0
    %706 = vmatprep.subr.bf16.mxu0 %v507
    %707 = vmatpush1.bf16.msra.mxu0 %v506
    %708 = vmatprep.subr.bf16.mxu0 %v509
    %709 = vmatpush1.bf16.msra.mxu0 %v508
    %710 = vmatprep.subr.bf16.mxu0 %v511
    %711 = vmatpush1.bf16.msra.mxu0 %v510
    %712 = vmatprep.subr.bf16.mxu0 %v513
    %713 = vmatpush1.bf16.msra.mxu0 %v512
    %714 = vmatprep.subr.bf16.mxu0 %v515
    %715 = vmatpush1.bf16.msra.mxu0 %v514
    %716 = vmatprep.subr.bf16.mxu0 %v517
    %717 = vmatpush1.bf16.msra.mxu0 %v516
    %718 = vmatprep.subr.bf16.mxu0 %v519
    %719 = vmatpush1.bf16.msra.mxu0 %v518
    %720 = vmatprep.subr.bf16.mxu0 %v521
    %721 = vmatpush1.bf16.msra.mxu0 %v520
    %722 = vmatprep.subr.bf16.mxu0 %v523
    %723 = vmatpush1.bf16.msra.mxu0 %v522
    %724 = vmatprep.subr.bf16.mxu0 %v525
    %725 = vmatpush1.bf16.msra.mxu0 %v524
    %726 = vmatprep.subr.bf16.mxu0 %v527
    %727 = vmatpush1.bf16.msra.mxu0 %v526
    %728 = vmatprep.subr.bf16.mxu0 %v529
    %729 = vmatpush1.bf16.msra.mxu0 %v528
    %730 = vmatprep.subr.bf16.mxu0 %v531
    %731 = vmatpush1.bf16.msra.mxu0 %v530
    %732 = vmatprep.subr.bf16.mxu0 %v533
    %733 = vmatpush1.bf16.msra.mxu0 %v532
    %734 = vmatprep.subr.bf16.mxu0 %v535
    %735 = vmatpush1.bf16.msra.mxu0 %v534
    %736 = vmatprep.subr.bf16.mxu0 %v537
    %737 = vmatpush1.bf16.msra.mxu0 %v536
    %738 = vmatprep.mubr.bf16.mxu0 %v89
    %739 = vmatmul.mubr.bf16.gmra.mrb[0].mxu0 %v88
    %v740 = vpop.f32.mrb[0].mxu0
    %v741 = vadd.f32 %v205, %v740
    %v742 = vpop.f32.mrb[0].mxu0
    %v743 = vadd.f32 %v209, %v742
    %v744 = vpop.f32.mrb[0].mxu0
    %v745 = vpop.f32.mrb[0].mxu0
    %746 = vdwg.mxu0
    %747 = vmatprep.subr.bf16.mxu0 %v539
    %748 = vmatpush1.bf16.msra.mxu0 %v538
    %749 = vmatprep.subr.bf16.mxu0 %v541
    %750 = vmatpush1.bf16.msra.mxu0 %v540
    %751 = vmatprep.subr.bf16.mxu0 %v543
    %752 = vmatpush1.bf16.msra.mxu0 %v542
    %753 = vmatprep.subr.bf16.mxu0 %v545
    %754 = vmatpush1.bf16.msra.mxu0 %v544
    %755 = vmatprep.subr.bf16.mxu0 %v547
    %756 = vmatpush1.bf16.msra.mxu0 %v546
    %757 = vmatprep.subr.bf16.mxu0 %v549
    %758 = vmatpush1.bf16.msra.mxu0 %v548
    %759 = vmatprep.subr.bf16.mxu0 %v551
    %760 = vmatpush1.bf16.msra.mxu0 %v550
    %761 = vmatprep.subr.bf16.mxu0 %v553
    %762 = vmatpush1.bf16.msra.mxu0 %v552
    %763 = vmatprep.subr.bf16.mxu0 %v555
    %764 = vmatpush1.bf16.msra.mxu0 %v554
    %765 = vmatprep.subr.bf16.mxu0 %v557
    %766 = vmatpush1.bf16.msra.mxu0 %v556
    %767 = vmatprep.subr.bf16.mxu0 %v559
    %768 = vmatpush1.bf16.msra.mxu0 %v558
    %769 = vmatprep.subr.bf16.mxu0 %v561
    %770 = vmatpush1.bf16.msra.mxu0 %v560
    %771 = vmatprep.subr.bf16.mxu0 %v563
    %772 = vmatpush1.bf16.msra.mxu0 %v562
    %773 = vmatprep.subr.bf16.mxu0 %v565
    %774 = vmatpush1.bf16.msra.mxu0 %v564
    %775 = vmatprep.subr.bf16.mxu0 %v567
    %776 = vmatpush1.bf16.msra.mxu0 %v566
    %777 = vmatprep.subr.bf16.mxu0 %v569
    %778 = vmatpush1.bf16.msra.mxu0 %v568
    %779 = vmatprep.mubr.bf16.mxu0 %v91
    %780 = vmatmul.mubr.bf16.gmra.mrb[0].mxu0 %v90
    %v781 = vpop.f32.mrb[0].mxu0
    %v782 = vadd.f32 %v741, %v781
    %v783 = vpop.f32.mrb[0].mxu0
    %v784 = vadd.f32 %v743, %v783
    %v785 = vpop.f32.mrb[0].mxu0
    %v786 = vpop.f32.mrb[0].mxu0
    %787 = vdwg.mxu0
    %788 = vmatprep.subr.bf16.mxu0 %v571
    %789 = vmatpush1.bf16.msra.mxu0 %v570
    %790 = vmatprep.subr.bf16.mxu0 %v573
    %791 = vmatpush1.bf16.msra.mxu0 %v572
    %792 = vmatprep.subr.bf16.mxu0 %v575
    %793 = vmatpush1.bf16.msra.mxu0 %v574
    %794 = vmatprep.subr.bf16.mxu0 %v577
    %795 = vmatpush1.bf16.msra.mxu0 %v576
    %796 = vmatprep.subr.bf16.mxu0 %v579
    %797 = vmatpush1.bf16.msra.mxu0 %v578
    %798 = vmatprep.subr.bf16.mxu0 %v581
    %799 = vmatpush1.bf16.msra.mxu0 %v580
    %800 = vmatprep.subr.bf16.mxu0 %v583
    %801 = vmatpush1.bf16.msra.mxu0 %v582
    %802 = vmatprep.subr.bf16.mxu0 %v585
    %803 = vmatpush1.bf16.msra.mxu0 %v584
    %804 = vmatprep.subr.bf16.mxu0 %v587
    %805 = vmatpush1.bf16.msra.mxu0 %v586
    %806 = vmatprep.subr.bf16.mxu0 %v589
    %807 = vmatpush1.bf16.msra.mxu0 %v588
    %808 = vmatprep.subr.bf16.mxu0 %v591
    %809 = vmatpush1.bf16.msra.mxu0 %v590
    %810 = vmatprep.subr.bf16.mxu0 %v593
    %811 = vmatpush1.bf16.msra.mxu0 %v592
    %812 = vmatprep.subr.bf16.mxu0 %v595
    %813 = vmatpush1.bf16.msra.mxu0 %v594
    %814 = vmatprep.subr.bf16.mxu0 %v597
    %815 = vmatpush1.bf16.msra.mxu0 %v596
    %816 = vmatprep.subr.bf16.mxu0 %v599
    %817 = vmatpush1.bf16.msra.mxu0 %v598
    %818 = vmatprep.subr.bf16.mxu0 %v601
    %819 = vmatpush1.bf16.msra.mxu0 %v600
    %820 = vmatprep.mubr.bf16.mxu0 %v93
    %821 = vmatmul.mubr.bf16.gmra.mrb[0].mxu0 %v92
    %v822 = vpop.f32.mrb[0].mxu0
    %v823 = vadd.f32 %v782, %v822
    %v824 = vpop.f32.mrb[0].mxu0
    %v825 = vadd.f32 %v784, %v824
    %v826 = vpop.f32.mrb[0].mxu0
    %v827 = vpop.f32.mrb[0].mxu0
    %828 = vdwg.mxu0
    %829 = vmatprep.subr.bf16.mxu0 %v603
    %830 = vmatpush1.bf16.msra.mxu0 %v602
    %831 = vmatprep.subr.bf16.mxu0 0
    %832 = vmatpush1.bf16.msra.mxu0 0
    %833 = vmatprep.subr.bf16.mxu0 0
    %834 = vmatpush1.bf16.msra.mxu0 0
    %835 = vmatprep.subr.bf16.mxu0 0
    %836 = vmatpush1.bf16.msra.mxu0 0
    %837 = vmatprep.subr.bf16.mxu0 0
    %838 = vmatpush1.bf16.msra.mxu0 0
    %839 = vmatprep.subr.bf16.mxu0 0
    %840 = vmatpush1.bf16.msra.mxu0 0
    %841 = vmatprep.subr.bf16.mxu0 0
    %842 = vmatpush1.bf16.msra.mxu0 0
    %843 = vmatprep.subr.bf16.mxu0 0
    %844 = vmatpush1.bf16.msra.mxu0 0
    %845 = vmatprep.subr.bf16.mxu0 0
    %846 = vmatpush1.bf16.msra.mxu0 0
    %847 = vmatprep.subr.bf16.mxu0 0
    %848 = vmatpush1.bf16.msra.mxu0 0
    %849 = vmatprep.subr.bf16.mxu0 0
    %850 = vmatpush1.bf16.msra.mxu0 0
    %851 = vmatprep.subr.bf16.mxu0 0
    %852 = vmatpush1.bf16.msra.mxu0 0
    %853 = vmatprep.subr.bf16.mxu0 0
    %854 = vmatpush1.bf16.msra.mxu0 0
    %855 = vmatprep.subr.bf16.mxu0 0
    %856 = vmatpush1.bf16.msra.mxu0 0
    %857 = vmatprep.subr.bf16.mxu0 0
    %858 = vmatpush1.bf16.msra.mxu0 0
    %859 = vmatprep.subr.bf16.mxu0 0
    %860 = vmatpush1.bf16.msra.mxu0 0
    %861 = vmatprep.mubr.bf16.mxu0 0
    %862 = vmatmul.mubr.bf16.gmra.mrb[0].mxu0 %v704
    %v863 = vpop.f32.mrb[0].mxu0
    %v864 = vadd.f32 %v823, %v863
    %v865 = vpop.f32.mrb[0].mxu0
    %v866 = vadd.f32 %v825, %v865
    %v867 = vpop.f32.mrb[0].mxu0
    %v868 = vpop.f32.mrb[0].mxu0
    %869 = vdwg.mxu0
    %870 = vrot.lane.b32.xlu0 %v864, 127
    %v871 = vpop.permute.xlu0 %870
    %872 = vrot.lane.b32.xlu0 %v866, 127
    %v873 = vpop.permute.xlu0 %872
    %vm874 = vcmp.lt.s32.totalorder %v96, 127
    %v875 = vsel %vm874, %v871, %v873
    %v876 = vsel %vm874, %v873, %v871
    %877 = vrot.lane.b32.xlu0 %v864, 1
    %v878 = vpop.permute.xlu0 %877
    %879 = vrot.lane.b32.xlu0 %v866, 1
    %v880 = vpop.permute.xlu0 %879
    %vm881 = vcmp.lt.s32.totalorder %v96, 1
    %v882 = vsel %vm881, %v878, %v880
    %v883 = vsel %vm881, %v880, %v878
    %v884 = vsel %vm100, 1, 0
    %v885 = vsel %vm101, 1, 0
    %vm886 = vcmp.eq.s32.totalorder %v884, 1
    %vm887 = vcmp.eq.s32.totalorder %v885, 1
    %v888 = vsel %vm886, %v875, %v883
    %v889 = vsel %vm887, %v876, %v882
    %vm890 = vcmp.ge.f32.partialorder %v864, %v888
    %vm891 = vcmp.ge.f32.partialorder %v866, %v889
    %v892 = vsel %vm890, %v864, 0.0
    %v893 = vsel %vm891, %v866, 0.0
    %v894 = vpack.c.bf16 %v892, %v892
    %v895 = vpack.c.bf16 %v893, %v893
    %v896 = vld [vmem:[#allocation7] sm:$0xff]
    %v897 = vld [vmem:[#allocation7 + $0x8] sm:$0xff]
    %v898 = vld [vmem:[#allocation7 + $0x10] sm:$0xff]
    %v899 = vld [vmem:[#allocation7 + $0x18] sm:$0xff]
    %v900 = vld [vmem:[#allocation7 + $0x20] sm:$0xff]
    %v901 = vld [vmem:[#allocation7 + $0x28] sm:$0xff]
    %v902 = vld [vmem:[#allocation7 + $0x30] sm:$0xff]
    %v903 = vld [vmem:[#allocation7 + $0x38] sm:$0xff]
    %v904 = vld [vmem:[#allocation7 + $0x40] sm:$0xff]
    %v905 = vld [vmem:[#allocation7 + $0x48] sm:$0xff]
    %v906 = vld [vmem:[#allocation7 + $0x50] sm:$0xff]
    %v907 = vld [vmem:[#allocation7 + $0x58] sm:$0xff]
    %v908 = vld [vmem:[#allocation7 + $0x60] sm:$0xff]
    %v909 = vld [vmem:[#allocation7 + $0x68] sm:$0xff]
    %v910 = vld [vmem:[#allocation7 + $0x70] sm:$0xff]
    %v911 = vld [vmem:[#allocation7 + $0x78] sm:$0xff]
    %v912 = vld [vmem:[#allocation7 + $0x80] sm:$0xff]
    %v913 = vld [vmem:[#allocation7 + $0x88] sm:$0xff]
    %v914 = vld [vmem:[#allocation7 + $0x90] sm:$0xff]
    %v915 = vld [vmem:[#allocation7 + $0x98] sm:$0xff]
    %v916 = vld [vmem:[#allocation7 + $0xa0] sm:$0xff]
    %v917 = vld [vmem:[#allocation7 + $0xa8] sm:$0xff]
    %v918 = vld [vmem:[#allocation7 + $0xb0] sm:$0xff]
    %v919 = vld [vmem:[#allocation7 + $0xb8] sm:$0xff]
    %v920 = vld [vmem:[#allocation7 + $0xc0] sm:$0xff]
    %v921 = vld [vmem:[#allocation7 + $0xc8] sm:$0xff]
    %v922 = vld [vmem:[#allocation7 + $0xd0] sm:$0xff]
    %v923 = vld [vmem:[#allocation7 + $0xd8] sm:$0xff]
    %v924 = vld [vmem:[#allocation7 + $0xe0] sm:$0xff]
    %v925 = vld [vmem:[#allocation7 + $0xe8] sm:$0xff]
    %v926 = vld [vmem:[#allocation7 + $0xf0] sm:$0xff]
    %v927 = vld [vmem:[#allocation7 + $0xf8] sm:$0xff]
    %v928 = vld [vmem:[%s4] sm:$0x3]
    %v930 = vlaneseq
    %v931 = vshrl.u32 %v930, 7
    %v932 = vsub.s32 0, %v931
    %v933 = vrot.slane %v928, %v932
    %v934 = vlaneseq
    %v935 = vshrl.u32 %v934, 7
    %v936 = vsub.s32 1, %v935
    %v937 = vrot.slane %v928, %v936
    %v972 = vunpack.c.l.b16 %v896
    %v973 = vunpack.c.h.b16 %v896
    %v974 = vunpack.c.l.b16 %v897
    %v975 = vunpack.c.h.b16 %v897
    %v976 = vunpack.c.l.b16 %v898
    %v977 = vunpack.c.h.b16 %v898
    %v978 = vunpack.c.l.b16 %v899
    %v979 = vunpack.c.h.b16 %v899
    %v980 = vunpack.c.l.b16 %v900
    %v981 = vunpack.c.h.b16 %v900
    %v982 = vunpack.c.l.b16 %v901
    %v983 = vunpack.c.h.b16 %v901
    %v984 = vunpack.c.l.b16 %v902
    %v985 = vunpack.c.h.b16 %v902
    %v986 = vunpack.c.l.b16 %v903
    %v987 = vunpack.c.h.b16 %v903
    %v988 = vunpack.c.l.b16 %v904
    %v989 = vunpack.c.h.b16 %v904
    %v990 = vunpack.c.l.b16 %v905
    %v991 = vunpack.c.h.b16 %v905
    %v992 = vunpack.c.l.b16 %v906
    %v993 = vunpack.c.h.b16 %v906
    %v994 = vunpack.c.l.b16 %v907
    %v995 = vunpack.c.h.b16 %v907
    %v996 = vunpack.c.l.b16 %v908
    %v997 = vunpack.c.h.b16 %v908
    %v998 = vunpack.c.l.b16 %v909
    %v999 = vunpack.c.h.b16 %v909
    %v1000 = vunpack.c.l.b16 %v910
    %v1001 = vunpack.c.h.b16 %v910
    %v1002 = vunpack.c.l.b16 %v911
    %v1003 = vunpack.c.h.b16 %v911
    %v1004 = vunpack.c.l.b16 %v912
    %v1005 = vunpack.c.h.b16 %v912
    %v1006 = vunpack.c.l.b16 %v913
    %v1007 = vunpack.c.h.b16 %v913
    %v1008 = vunpack.c.l.b16 %v914
    %v1009 = vunpack.c.h.b16 %v914
    %v1010 = vunpack.c.l.b16 %v915
    %v1011 = vunpack.c.h.b16 %v915
    %v1012 = vunpack.c.l.b16 %v916
    %v1013 = vunpack.c.h.b16 %v916
    %v1014 = vunpack.c.l.b16 %v917
    %v1015 = vunpack.c.h.b16 %v917
    %v1016 = vunpack.c.l.b16 %v918
    %v1017 = vunpack.c.h.b16 %v918
    %v1018 = vunpack.c.l.b16 %v919
    %v1019 = vunpack.c.h.b16 %v919
    %v1020 = vunpack.c.l.b16 %v920
    %v1021 = vunpack.c.h.b16 %v920
    %v1022 = vunpack.c.l.b16 %v921
    %v1023 = vunpack.c.h.b16 %v921
    %v1024 = vunpack.c.l.b16 %v922
    %v1025 = vunpack.c.h.b16 %v922
    %v1026 = vunpack.c.l.b16 %v923
    %v1027 = vunpack.c.h.b16 %v923
    %v1028 = vunpack.c.l.b16 %v924
    %v1029 = vunpack.c.h.b16 %v924
    %v1030 = vunpack.c.l.b16 %v925
    %v1031 = vunpack.c.h.b16 %v925
    %v1032 = vunpack.c.l.b16 %v926
    %v1033 = vunpack.c.h.b16 %v926
    %v1034 = vunpack.c.l.b16 %v927
    %v1035 = vunpack.c.h.b16 %v927
    %v1036 = vpack.c.b16 %v974, %v972
    %v1037 = vpack.c.b16 %v975, %v973
    %v1038 = vpack.c.b16 %v978, %v976
    %v1039 = vpack.c.b16 %v979, %v977
    %v1040 = vpack.c.b16 %v982, %v980
    %v1041 = vpack.c.b16 %v983, %v981
    %v1042 = vpack.c.b16 %v986, %v984
    %v1043 = vpack.c.b16 %v987, %v985
    %v1044 = vpack.c.b16 %v990, %v988
    %v1045 = vpack.c.b16 %v991, %v989
    %v1046 = vpack.c.b16 %v994, %v992
    %v1047 = vpack.c.b16 %v995, %v993
    %v1048 = vpack.c.b16 %v998, %v996
    %v1049 = vpack.c.b16 %v999, %v997
    %v1050 = vpack.c.b16 %v1002, %v1000
    %v1051 = vpack.c.b16 %v1003, %v1001
    %v1052 = vpack.c.b16 %v1006, %v1004
    %v1053 = vpack.c.b16 %v1007, %v1005
    %v1054 = vpack.c.b16 %v1010, %v1008
    %v1055 = vpack.c.b16 %v1011, %v1009
    %v1056 = vpack.c.b16 %v1014, %v1012
    %v1057 = vpack.c.b16 %v1015, %v1013
    %v1058 = vpack.c.b16 %v1018, %v1016
    %v1059 = vpack.c.b16 %v1019, %v1017
    %v1060 = vpack.c.b16 %v1022, %v1020
    %v1061 = vpack.c.b16 %v1023, %v1021
    %v1062 = vpack.c.b16 %v1026, %v1024
    %v1063 = vpack.c.b16 %v1027, %v1025
    %v1064 = vpack.c.b16 %v1030, %v1028
    %v1065 = vpack.c.b16 %v1031, %v1029
    %v1066 = vpack.c.b16 %v1034, %v1032
    %v1067 = vpack.c.b16 %v1035, %v1033
    %1100 = vmatprep.subr.bf16.mxu0 %v1037
    %1101 = vmatpush1.bf16.msra.mxu0 %v1036
    %1102 = vmatprep.subr.bf16.mxu0 %v1039
    %1103 = vmatpush1.bf16.msra.mxu0 %v1038
    %1104 = vmatprep.subr.bf16.mxu0 %v1041
    %1105 = vmatpush1.bf16.msra.mxu0 %v1040
    %1106 = vmatprep.subr.bf16.mxu0 %v1043
    %1107 = vmatpush1.bf16.msra.mxu0 %v1042
    %1108 = vmatprep.subr.bf16.mxu0 %v1045
    %1109 = vmatpush1.bf16.msra.mxu0 %v1044
    %1110 = vmatprep.subr.bf16.mxu0 %v1047
    %1111 = vmatpush1.bf16.msra.mxu0 %v1046
    %1112 = vmatprep.subr.bf16.mxu0 %v1049
    %1113 = vmatpush1.bf16.msra.mxu0 %v1048
    %1114 = vmatprep.subr.bf16.mxu0 %v1051
    %1115 = vmatpush1.bf16.msra.mxu0 %v1050
    %1116 = vmatprep.subr.bf16.mxu0 %v1053
    %1117 = vmatpush1.bf16.msra.mxu0 %v1052
    %1118 = vmatprep.subr.bf16.mxu0 %v1055
    %1119 = vmatpush1.bf16.msra.mxu0 %v1054
    %1120 = vmatprep.subr.bf16.mxu0 %v1057
    %1121 = vmatpush1.bf16.msra.mxu0 %v1056
    %1122 = vmatprep.subr.bf16.mxu0 %v1059
    %1123 = vmatpush1.bf16.msra.mxu0 %v1058
    %1124 = vmatprep.subr.bf16.mxu0 %v1061
    %1125 = vmatpush1.bf16.msra.mxu0 %v1060
    %1126 = vmatprep.subr.bf16.mxu0 %v1063
    %1127 = vmatpush1.bf16.msra.mxu0 %v1062
    %1128 = vmatprep.subr.bf16.mxu0 %v1065
    %1129 = vmatpush1.bf16.msra.mxu0 %v1064
    %1130 = vmatprep.subr.bf16.mxu0 %v1067
    %1131 = vmatpush1.bf16.msra.mxu0 %v1066
    %1132 = vmatprep.mubr.bf16.mxu0 %v895
    %1133 = vmatmul.mubr.bf16.gmra.mrb[0].mxu0 %v894
    %v1134 = vpop.f32.mrb[0].mxu0
    %v1135 = vadd.f32 %v933, %v1134
    %v1136 = vpop.f32.mrb[0].mxu0
    %v1137 = vadd.f32 %v937, %v1136
    %v1138 = vpop.f32.mrb[0].mxu0
    %v1139 = vpop.f32.mrb[0].mxu0
    %1140 = vdwg.mxu0
    %1141 = vrot.lane.b32.xlu0 %v1135, 127
    %v1142 = vpop.permute.xlu0 %1141
    %1143 = vrot.lane.b32.xlu0 %v1137, 127
    %v1144 = vpop.permute.xlu0 %1143
    %v1145 = vsel %vm874, %v1142, %v1144
    %v1146 = vsel %vm874, %v1144, %v1142
    %1147 = vrot.lane.b32.xlu0 %v1135, 1
    %v1148 = vpop.permute.xlu0 %1147
    %1149 = vrot.lane.b32.xlu0 %v1137, 1
    %v1150 = vpop.permute.xlu0 %1149
    %v1151 = vsel %vm881, %v1148, %v1150
    %v1152 = vsel %vm881, %v1150, %v1148
    %v1153 = vsel %vm886, %v1145, %v1152
    %v1154 = vsel %vm887, %v1146, %v1151
    %vm1155 = vcmp.ge.f32.partialorder %v1135, %v1153
    %vm1156 = vcmp.ge.f32.partialorder %v1137, %v1154
    %v1157 = vsel %vm1155, %v1135, 0.0
    %v1158 = vsel %vm1156, %v1137, 0.0
    %v1159 = vpack.c.bf16 %v1157, %v1157
    %v1160 = vpack.c.bf16 %v1158, %v1158
    %v1161 = vld [vmem:[#allocation8] sm:$0xf]
    %v1162 = vld [vmem:[#allocation8 + $0x4] sm:$0xf]
    %v1163 = vld [vmem:[#allocation8 + $0x8] sm:$0xf]
    %v1164 = vld [vmem:[#allocation8 + $0xc] sm:$0xf]
    %v1165 = vld [vmem:[#allocation8 + $0x10] sm:$0xf]
    %v1166 = vld [vmem:[#allocation8 + $0x14] sm:$0xf]
    %v1167 = vld [vmem:[#allocation8 + $0x18] sm:$0xf]
    %v1168 = vld [vmem:[#allocation8 + $0x1c] sm:$0xf]
    %v1169 = vld [vmem:[#allocation8 + $0x20] sm:$0xf]
    %v1170 = vld [vmem:[#allocation8 + $0x24] sm:$0xf]
    %v1171 = vld [vmem:[#allocation8 + $0x28] sm:$0xf]
    %v1172 = vld [vmem:[#allocation8 + $0x2c] sm:$0xf]
    %v1173 = vld [vmem:[#allocation8 + $0x30] sm:$0xf]
    %v1174 = vld [vmem:[#allocation8 + $0x34] sm:$0xf]
    %v1175 = vld [vmem:[#allocation8 + $0x38] sm:$0xf]
    %v1176 = vld [vmem:[#allocation8 + $0x3c] sm:$0xf]
    %v1177 = vld [vmem:[#allocation8 + $0x40] sm:$0xf]
    %v1178 = vld [vmem:[#allocation8 + $0x44] sm:$0xf]
    %v1179 = vld [vmem:[#allocation8 + $0x48] sm:$0xf]
    %v1180 = vld [vmem:[#allocation8 + $0x4c] sm:$0xf]
    %v1181 = vld [vmem:[#allocation8 + $0x50] sm:$0xf]
    %v1182 = vld [vmem:[#allocation8 + $0x54] sm:$0xf]
    %v1183 = vld [vmem:[#allocation8 + $0x58] sm:$0xf]
    %v1184 = vld [vmem:[#allocation8 + $0x5c] sm:$0xf]
    %v1185 = vld [vmem:[#allocation8 + $0x60] sm:$0xf]
    %v1186 = vld [vmem:[#allocation8 + $0x64] sm:$0xf]
    %v1187 = vld [vmem:[#allocation8 + $0x68] sm:$0xf]
    %v1188 = vld [vmem:[#allocation8 + $0x6c] sm:$0xf]
    %v1189 = vld [vmem:[#allocation8 + $0x70] sm:$0xf]
    %v1190 = vld [vmem:[#allocation8 + $0x74] sm:$0xf]
    %v1191 = vld [vmem:[#allocation8 + $0x78] sm:$0xf]
    %v1192 = vld [vmem:[#allocation8 + $0x7c] sm:$0xf]
    %v1193 = vld [vmem:[%s6] sm:$0x1]
    %v1195 = vlaneseq
    %v1196 = vshrl.u32 %v1195, 7
    %v1197 = vsub.s32 0, %v1196
    %v1198 = vrot.slane %v1193, %v1197
    %v1232 = vunpack.c.l.b16 %v1161
    %v1233 = vunpack.c.l.b16 %v1162
    %v1234 = vunpack.c.l.b16 %v1163
    %v1235 = vunpack.c.l.b16 %v1164
    %v1236 = vunpack.c.l.b16 %v1165
    %v1237 = vunpack.c.l.b16 %v1166
    %v1238 = vunpack.c.l.b16 %v1167
    %v1239 = vunpack.c.l.b16 %v1168
    %v1240 = vunpack.c.l.b16 %v1169
    %v1241 = vunpack.c.l.b16 %v1170
    %v1242 = vunpack.c.l.b16 %v1171
    %v1243 = vunpack.c.l.b16 %v1172
    %v1244 = vunpack.c.l.b16 %v1173
    %v1245 = vunpack.c.l.b16 %v1174
    %v1246 = vunpack.c.l.b16 %v1175
    %v1247 = vunpack.c.l.b16 %v1176
    %v1248 = vunpack.c.l.b16 %v1177
    %v1249 = vunpack.c.l.b16 %v1178
    %v1250 = vunpack.c.l.b16 %v1179
    %v1251 = vunpack.c.l.b16 %v1180
    %v1252 = vunpack.c.l.b16 %v1181
    %v1253 = vunpack.c.l.b16 %v1182
    %v1254 = vunpack.c.l.b16 %v1183
    %v1255 = vunpack.c.l.b16 %v1184
    %v1256 = vunpack.c.l.b16 %v1185
    %v1257 = vunpack.c.l.b16 %v1186
    %v1258 = vunpack.c.l.b16 %v1187
    %v1259 = vunpack.c.l.b16 %v1188
    %v1260 = vunpack.c.l.b16 %v1189
    %v1261 = vunpack.c.l.b16 %v1190
    %v1262 = vunpack.c.l.b16 %v1191
    %v1263 = vunpack.c.l.b16 %v1192
    %v1264 = vpack.c.b16 %v1233, %v1232
    %v1265 = vpack.c.b16 %v1235, %v1234
    %v1266 = vpack.c.b16 %v1237, %v1236
    %v1267 = vpack.c.b16 %v1239, %v1238
    %v1268 = vpack.c.b16 %v1241, %v1240
    %v1269 = vpack.c.b16 %v1243, %v1242
    %v1270 = vpack.c.b16 %v1245, %v1244
    %v1271 = vpack.c.b16 %v1247, %v1246
    %v1272 = vpack.c.b16 %v1249, %v1248
    %v1273 = vpack.c.b16 %v1251, %v1250
    %v1274 = vpack.c.b16 %v1253, %v1252
    %v1275 = vpack.c.b16 %v1255, %v1254
    %v1276 = vpack.c.b16 %v1257, %v1256
    %v1277 = vpack.c.b16 %v1259, %v1258
    %v1278 = vpack.c.b16 %v1261, %v1260
    %v1279 = vpack.c.b16 %v1263, %v1262
    %1296 = vmatprep.subr.bf16.mxu0 0
    %1297 = vmatpush1.bf16.msra.mxu0 %v1264
    %1298 = vmatprep.subr.bf16.mxu0 0
    %1299 = vmatpush1.bf16.msra.mxu0 %v1265
    %1300 = vmatprep.subr.bf16.mxu0 0
    %1301 = vmatpush1.bf16.msra.mxu0 %v1266
    %1302 = vmatprep.subr.bf16.mxu0 0
    %1303 = vmatpush1.bf16.msra.mxu0 %v1267
    %1304 = vmatprep.subr.bf16.mxu0 0
    %1305 = vmatpush1.bf16.msra.mxu0 %v1268
    %1306 = vmatprep.subr.bf16.mxu0 0
    %1307 = vmatpush1.bf16.msra.mxu0 %v1269
    %1308 = vmatprep.subr.bf16.mxu0 0
    %1309 = vmatpush1.bf16.msra.mxu0 %v1270
    %1310 = vmatprep.subr.bf16.mxu0 0
    %1311 = vmatpush1.bf16.msra.mxu0 %v1271
    %1312 = vmatprep.subr.bf16.mxu0 0
    %1313 = vmatpush1.bf16.msra.mxu0 %v1272
    %1314 = vmatprep.subr.bf16.mxu0 0
    %1315 = vmatpush1.bf16.msra.mxu0 %v1273
    %1316 = vmatprep.subr.bf16.mxu0 0
    %1317 = vmatpush1.bf16.msra.mxu0 %v1274
    %1318 = vmatprep.subr.bf16.mxu0 0
    %1319 = vmatpush1.bf16.msra.mxu0 %v1275
    %1320 = vmatprep.subr.bf16.mxu0 0
    %1321 = vmatpush1.bf16.msra.mxu0 %v1276
    %1322 = vmatprep.subr.bf16.mxu0 0
    %1323 = vmatpush1.bf16.msra.mxu0 %v1277
    %1324 = vmatprep.subr.bf16.mxu0 0
    %1325 = vmatpush1.bf16.msra.mxu0 %v1278
    %1326 = vmatprep.subr.bf16.mxu0 0
    %1327 = vmatpush1.bf16.msra.mxu0 %v1279
    %1328 = vmatprep.mubr.bf16.mxu0 %v1160
    %1329 = vmatmul.mubr.bf16.gmra.mrb[0].mxu0 %v1159
    %v1330 = vpop.f32.mrb[0].mxu0
    %v1331 = vadd.f32 %v1198, %v1330
    %v1332 = vpop.f32.mrb[0].mxu0
    %v1333 = vpop.f32.mrb[0].mxu0
    %v1334 = vpop.f32.mrb[0].mxu0
    %1335 = vdwg.mxu0
    %v1336 = vpack.c.bf16 %v1331, %v1331
    %1337 = vst [vmem:[#allocation10] sm:$0xf] %v1336
    // Predicated region
    $region46: #{tpu_custom_call.1} parent=1 // pred_check
      _
    $region47: #{tpu_custom_call.1} parent=1 // pred_check_branch
      %1339 = sbr.rel (0) target = $region49
    $region48: #{tpu_custom_call.1} parent=1 // pred_region
      %s1341 = ssub.s32 64, 64
      %1342 = vsyncadd [#allocation4], %s1341
      %s1344 = sshll.u32 [#allocation10], 4
      %s1345 = int_to_ptr.vmem [resolvable:$true] %s1344
      %1347 = dma.vmem_to_hbm [thread:$0]  %s1345, 64, %s7, [#allocation4]
    $region49: #{tpu_custom_call.1} parent=1 // pred_fallthru
      _
    // Predicated region
    $region50: #{tpu_custom_call.1} parent=1 // pred_check
      _
    $region51: #{tpu_custom_call.1} parent=1 // pred_check_branch
      %1349 = sbr.rel (0) target = $region53
    $region52: #{tpu_custom_call.1} parent=1 // pred_region
      %1350 = dma.done [#allocation4], 64
    $region53: #{tpu_custom_call.1} parent=1 // pred_fallthru
      _
    %1351 = vsyncpa [#allocation3], 1
    %1352 = vsyncpa [#allocation6], 1
    %1353 = vsyncpa [#allocation9], 1
    %1354 = vsyncpa [#allocation4], 1

</llo_original>
